<compile_context>
chip_gen: v6e
topology: v6e:2x2x1
jax: 0.10.0
libtpu: 0.0.40
codegen_flags: <defaults>
</compile_context>

<pallas_src>
import functools
from typing import NamedTuple

import jax
import jax.numpy as jnp
from jax.experimental import pallas as pl
from jax.experimental.pallas import tpu as pltpu


def _round_up(x: int, m: int) -> int:
    return (x + m - 1) // m * m


def _cdiv(a: int, b: int) -> int:
    return (a + b - 1) // b


# --------------------------------------------------------------------------
# Hardware queries (cached, queried once per process)
# --------------------------------------------------------------------------

@functools.lru_cache(maxsize=None)
def _vmem_capacity_bytes() -> int:
    try:
        cap = int(pltpu.get_tpu_info().vmem_capacity_bytes)
        if cap > 0:
            return cap
    except Exception:
        pass
    return 64 << 20  # conservative fallback: v7x per-TensorCore VMEM


@functools.lru_cache(maxsize=None)
def _device_kind() -> str:
    try:
        return jax.devices()[0].device_kind.lower()
    except Exception:
        return ""


@functools.lru_cache(maxsize=None)
def _is_v5e() -> bool:
    k = _device_kind()
    return ("v5e" in k) or ("v5 lite" in k) or ("v5lite" in k)


@functools.lru_cache(maxsize=None)
def _has_two_tensorcores() -> bool:
    # v7x has 2 TensorCores per chip (v4/v5p megacore too); v5e/v6e are 1 TC.
    k = _device_kind()
    return ("v7" in k) or ("v4" in k) or ("v5p" in k)


@functools.lru_cache(maxsize=None)
def _pipeline_mode_supported() -> bool:
    """One-time capability probe for BlockSpec(pipeline_mode=pl.Buffered(n))."""
    def _copy(x_ref, o_ref):
        o_ref[...] = x_ref[...]

    try:
        x = jnp.zeros((8, 128), jnp.float32)
        out = pl.pallas_call(
            _copy,
            out_shape=jax.ShapeDtypeStruct((8, 128), jnp.float32),
            grid=(1,),
            in_specs=[pl.BlockSpec((8, 128), lambda i: (0, 0),
                                   pipeline_mode=pl.Buffered(1))],
            out_specs=pl.BlockSpec((8, 128), lambda i: (0, 0)),
        )(x)
        jax.block_until_ready(out)
        return True
    except Exception:
        return False


# --------------------------------------------------------------------------
# Kernel bodies
# --------------------------------------------------------------------------

def _mlp_kernel_resident(x_ref, w1_ref, b1_ref, w2_ref, b2_ref, o_ref):
    # Weights fully resident in VMEM; single pass, no accumulator scratch.
    x = x_ref[...].astype(w1_ref.dtype)
    h = jnp.dot(x, w1_ref[...], preferred_element_type=jnp.float32)
    h = h + b1_ref[...]
    h = jnp.minimum(jnp.maximum(h, 0.0), 6.0)                 # ReLU6 (f32)
    out = jnp.dot(h.astype(w2_ref.dtype), w2_ref[...],
                  preferred_element_type=jnp.float32)
    o_ref[...] = (out + b2_ref[...]).astype(o_ref.dtype)


def _mlp_kernel_streamed(x_ref, w1_ref, b1_ref, w2_ref, b2_ref, o_ref, acc_ref):
    # Hidden dimension streamed along grid axis 1; f32 accumulator scratch.
    k = pl.program_id(1)

    @pl.when(k == 0)
    def _init():
        acc_ref[...] = jnp.zeros_like(acc_ref)

    x = x_ref[...].astype(w1_ref.dtype)
    h = jnp.dot(x, w1_ref[...], preferred_element_type=jnp.float32)
    h = h + b1_ref[...]
    h = jnp.minimum(jnp.maximum(h, 0.0), 6.0)                 # ReLU6 (f32)
    acc_ref[...] += jnp.dot(h.astype(w2_ref.dtype), w2_ref[...],
                            preferred_element_type=jnp.float32)

    @pl.when(k == pl.num_programs(1) - 1)
    def _finalize():
        o_ref[...] = (acc_ref[...] + b2_ref[...]).astype(o_ref.dtype)


# --------------------------------------------------------------------------
# One-time parameter preparation (cast / pad / tiling decision)
# --------------------------------------------------------------------------

class MlpParams(NamedTuple):
    w1: jax.Array          # (dim, hidden_p), compute dtype
    b1: jax.Array          # (1, hidden_p), f32
    w2: jax.Array          # (hidden_p, dim), compute dtype
    b2: jax.Array          # (1, dim), f32
    dim: int
    hidden: int            # logical (unpadded) hidden size
    hidden_p: int          # padded hidden size (== hidden when resident)
    hidden_tile: int       # hidden chunk size th (== hidden_p when resident)
    n_k: int               # number of hidden chunks
    stream_weight_buffers: int


def prepare_mlp_params(w1, b1, w2, b2, *, compute_dtype=jnp.bfloat16,
                       hidden_tile=None) -> MlpParams:
    """Prepare fc1/fc2 parameters once: cast to the MXU compute dtype and
    choose resident-vs-streamed hidden tiling from this chip's VMEM.

    Args:
      w1: (dim, hidden)   == torch fc1.weight.T
      b1: (hidden,)
      w2: (hidden, dim)   == torch fc2.weight.T
      b2: (dim,)
      compute_dtype: MXU matmul dtype (bf16 default; accumulation stays f32).
      hidden_tile: optional forced hidden chunk (multiple of 128); < hidden
        forces streaming (mostly for tests / very large models).
    """
    dim, hidden = w1.shape
    assert w2.shape == (hidden, dim)
    w_bytes = jnp.dtype(compute_dtype).itemsize

    usable_vmem = max(_vmem_capacity_bytes() - (8 << 20), 16 << 20)
    stream_buf = 3 if (_is_v5e() and _pipeline_mode_supported()) else 2

    if hidden_tile is not None:
        assert hidden_tile % 128 == 0, "hidden_tile must be a multiple of 128"
        th = hidden if hidden_tile >= hidden else hidden_tile
    else:
        resident_bytes = 2 * dim * hidden * w_bytes + (hidden + dim) * 4
        if resident_bytes <= int(usable_vmem * 0.45):
            th = hidden                                   # fully resident
        else:
            # Streamed: largest 256-aligned hidden chunk whose multi-buffered
            # w1/w2 slices fit next to generous activation tiles (tm <= 512).
            act_bytes = 2 * 512 * dim * 4 * 2 + 512 * dim * 4   # x, out, acc
            budget = max(int(usable_vmem * 0.6) - act_bytes,
                         stream_buf * 2 * dim * 256 * w_bytes)
            per_unit = stream_buf * 2 * dim * w_bytes + 2 * 4
            th = max(256, (budget // per_unit) // 256 * 256)
            th = min(th, _round_up(hidden, 256))
            if th >= hidden:
                th = hidden

    if th == hidden:
        hidden_p, n_k = hidden, 1
    else:
        hidden_p = _round_up(hidden, th)
        n_k = hidden_p // th
        if hidden_p != hidden:
            # Zero-padded hidden units contribute exactly 0 to the output:
            # relu6(x @ 0 + 0) = 0, and the matching w2 rows are zero.
            pad = hidden_p - hidden
            w1 = jnp.pad(w1, ((0, 0), (0, pad)))
            b1 = jnp.pad(b1, (0, pad))
            w2 = jnp.pad(w2, ((0, pad), (0, 0)))

    return MlpParams(
        w1=w1.astype(compute_dtype),
        b1=b1.reshape(1, hidden_p).astype(jnp.float32),
        w2=w2.astype(compute_dtype),
        b2=b2.reshape(1, dim).astype(jnp.float32),
        dim=dim, hidden=hidden, hidden_p=hidden_p,
        hidden_tile=th, n_k=n_k,
        stream_weight_buffers=stream_buf,
    )


# --------------------------------------------------------------------------
# Forward pass
# --------------------------------------------------------------------------

def mlp_pallas(params: MlpParams, x, *, row_tile=None):
    """Apply the MLP block: fc2(relu6(fc1(x))).  x: (..., dim)."""
    dim, hidden_p, th, n_k = (params.dim, params.hidden_p,
                              params.hidden_tile, params.n_k)
    assert x.shape[-1] == dim
    out_dtype = x.dtype
    lead_shape = x.shape[:-1]

    x2d = x.reshape(-1, dim)
    n_rows = x2d.shape[0]
    streaming = n_k > 1

    # ---- row tiling: big MXU-friendly tiles; no padding (Pallas masks the
    # partial last block; rows are independent so garbage rows are harmless).
    base = row_tile if row_tile is not None else (512 if streaming else 256)
    assert base % 8 == 0, "row_tile must be a multiple of 8"
    tm = min(base, _round_up(n_rows, 8))
    # v7x (2 TCs): ensure the parallel row axis has >= 2 tiles.
    if _has_two_tensorcores() and n_rows > 8 and _cdiv(n_rows, tm) < 2:
        tm = _round_up(_cdiv(n_rows, 2), 8)
    n_i = _cdiv(n_rows, tm)

    pipeline_ok = _pipeline_mode_supported()
    x_bytes = jnp.dtype(x2d.dtype).itemsize
    w_bytes = jnp.dtype(params.w1.dtype).itemsize
    o_bytes = jnp.dtype(out_dtype).itemsize

    def _const_spec(shape, index_map):
        # Grid-invariant block: single buffer halves its VMEM footprint.
        if pipeline_ok:
            return pl.BlockSpec(shape, index_map, pipeline_mode=pl.Buffered(1))
        return pl.BlockSpec(shape, index_map)

    def _stream_w_spec(shape, index_map):
        nb = params.stream_weight_buffers
        if pipeline_ok and nb != 2:
            return pl.BlockSpec(shape, index_map, pipeline_mode=pl.Buffered(nb))
        return pl.BlockSpec(shape, index_map)

    if not streaming:
        n_w_buf = 1 if pipeline_ok else 2
        vmem_need = (2 * tm * dim * (x_bytes + o_bytes)
                     + n_w_buf * 2 * dim * hidden_p * w_bytes
                     + n_w_buf * (hidden_p + dim) * 4)
        grid = (n_i,)
        in_specs = [
            pl.BlockSpec((tm, dim), lambda i: (i, 0)),               # x
            _const_spec((dim, hidden_p), lambda i: (0, 0)),          # w1
            _const_spec((1, hidden_p), lambda i: (0, 0)),            # b1
            _const_spec((hidden_p, dim), lambda i: (0, 0)),          # w2
            _const_spec((1, dim), lambda i: (0, 0)),                 # b2
        ]
        scratch = []
        kernel = _mlp_kernel_resident
        dims_sem = ("parallel",)
        weight_passes = 1
    else:
        nb_w = params.stream_weight_buffers if pipeline_ok else 2
        nb_c = 1 if pipeline_ok else 2
        vmem_need = (2 * tm * dim * (x_bytes + o_bytes)
                     + tm * dim * 4                                  # f32 acc
                     + nb_w * 2 * dim * th * w_bytes
                     + 2 * th * 4 + nb_c * dim * 4)
        grid = (n_i, n_k)
        in_specs = [
            pl.BlockSpec((tm, dim), lambda i, k: (i, 0)),            # x
            _stream_w_spec((dim, th), lambda i, k: (0, k)),          # w1 chunk
            pl.BlockSpec((1, th), lambda i, k: (0, k)),              # b1 chunk
            _stream_w_spec((th, dim), lambda i, k: (k, 0)),          # w2 chunk
            _const_spec((1, dim), lambda i, k: (0, 0)),              # b2
        ]
        scratch = [pltpu.VMEM((tm, dim), jnp.float32)]
        kernel = _mlp_kernel_streamed
        dims_sem = ("parallel", "arbitrary")
        weight_passes = n_i                                          # re-streamed

    out_spec = (pl.BlockSpec((tm, dim), lambda i: (i, 0)) if not streaming
                else pl.BlockSpec((tm, dim), lambda i, k: (i, 0)))

    # Generation-aware VMEM cap: never request more than physical VMEM.
    vmem_cap = _vmem_capacity_bytes()
    vmem_limit = max(int(vmem_need * 1.25) + (2 << 20), 32 << 20)
    vmem_limit = min(vmem_limit, vmem_cap - (4 << 20))

    cost = pl.CostEstimate(
        flops=int(4 * n_rows * dim * params.hidden),       # two matmuls
        transcendentals=0,
        bytes_accessed=int(n_rows * dim * (x_bytes + o_bytes)
                           + weight_passes * 2 * dim * hidden_p * w_bytes
                           + (hidden_p + dim) * 4),
    )

    out2d = pl.pallas_call(
        kernel,
        out_shape=jax.ShapeDtypeStruct((n_rows, dim), out_dtype),
        grid_spec=pltpu.PrefetchScalarGridSpec(
            num_scalar_prefetch=0,
            grid=grid,
            in_specs=in_specs,
            out_specs=out_spec,
            scratch_shapes=scratch,
        ),
        compiler_params=pltpu.CompilerParams(
            dimension_semantics=dims_sem,
            vmem_limit_bytes=int(vmem_limit),
        ),
        cost_estimate=cost,
    )(x2d, params.w1, params.b1, params.w2, params.b2)

    return out2d.reshape(*lead_shape, dim)


# --------------------------------------------------------------------------
# Reference + self-test
# --------------------------------------------------------------------------

def _reference_mlp(x, w1, b1, w2, b2):
    h = jnp.einsum("...d,dh->...h", x, w1,
                   precision=jax.lax.Precision.HIGHEST) + b1
    h = jnp.clip(h, 0.0, 6.0)
    return jnp.einsum("...h,hd->...d", h, w2,
                      precision=jax.lax.Precision.HIGHEST) + b2


if __name__ == "__main__":
    # Small deterministic shapes consistent with the module.  dim is lane-dense
    # (multiple of 128); dim_hidden=384 exercises a non-128-multiple hidden dim
    # on the resident path and hidden zero-padding on the streamed path.
    batch, seq, dim, dim_hidden = 2, 8, 128, 384

    key = jax.random.PRNGKey(0)
    kx, kw1, kb1, kw2, kb2 = jax.random.split(key, 5)

    x = jax.random.normal(kx, (batch, seq, dim), dtype=jnp.float32)
    # Deterministic synthetic parameters (not a checkpoint load).
    w1 = jax.random.normal(kw1, (dim, dim_hidden), dtype=jnp.float32) * 0.05
    b1 = jax.random.normal(kb1, (dim_hidden,), dtype=jnp.float32) * 0.01
    w2 = jax.random.normal(kw2, (dim_hidden, dim), dtype=jnp.float32) * 0.05
    b2 = jax.random.normal(kb2, (dim,), dtype=jnp.float32) * 0.01

    ref = _reference_mlp(x, w1, b1, w2, b2)

    # 1) Default path: bf16 MXU compute, weights fully resident, no scratch.
    params_bf16 = prepare_mlp_params(w1, b1, w2, b2)       # bf16 default
    out = jax.block_until_ready(mlp_pallas(params_bf16, x))
    assert out.shape == x.shape and out.dtype == x.dtype
    assert jnp.allclose(out, ref, atol=3e-2, rtol=3e-2), "mismatch (bf16 resident)"

    # 2) f32 compute path, resident weights, tight tolerance.
    params_f32 = prepare_mlp_params(w1, b1, w2, b2, compute_dtype=jnp.float32)
    out32 = jax.block_until_ready(mlp_pallas(params_f32, x))
    assert jnp.allclose(out32, ref, atol=1e-4, rtol=1e-4), "mismatch (f32 resident)"

    # 3) Forced hidden streaming (accumulator path + hidden zero-padding) with
    #    a ragged row count (exercises the unpadded partial row block).
    x_r = x[:, :5, :]                                      # 10 rows
    ref_r = _reference_mlp(x_r, w1, b1, w2, b2)
    params_stream = prepare_mlp_params(w1, b1, w2, b2, compute_dtype=jnp.float32,
                                       hidden_tile=256)    # 384 -> padded to 512
    out_r = jax.block_until_ready(mlp_pallas(params_stream, x_r))
    assert out_r.shape == x_r.shape
    assert jnp.allclose(out_r, ref_r, atol=1e-4, rtol=1e-4), "mismatch (streamed)"

    print("KERNEL_OK")
</pallas_src>

<mosaic_0001>
module attributes {stable_mosaic.version = 11 : i64} {
  func.func @_copy(%arg0: i32, %arg1: memref<8x128xf32, #tpu.memory_space<vmem>>, %arg2: memref<8x128xf32, #tpu.memory_space<vmem>>) attributes {dimension_semantics = [#tpu.dimension_semantics<arbitrary>], iteration_bounds = array<i64: 1>, scalar_prefetch = 0 : i64, scratch_operands = 0 : i64, tpu.core_type = #tpu.core_type<tc>, window_params = [{pipeline_mode = #tpu.pipeline_mode<synchronous>, transform_indices = @transform_0, window_bounds = array<i64: 8, 128>}, {pipeline_mode = #tpu.pipeline_mode<synchronous>, transform_indices = @transform_1, window_bounds = array<i64: 8, 128>}]} {
    %c0 = arith.constant 0 : index
    %c0_0 = arith.constant 0 : index
    %0 = vector.load %arg1[%c0, %c0_0] : memref<8x128xf32, #tpu.memory_space<vmem>>, vector<8x128xf32>
    %c0_1 = arith.constant 0 : index
    %c0_2 = arith.constant 0 : index
    %1 = vector.load %arg2[%c0_1, %c0_2] : memref<8x128xf32, #tpu.memory_space<vmem>>, vector<8x128xf32>
    tpu.vector_store %arg2[%c0_1, %c0_2], %0 {strides = array<i32>} : memref<8x128xf32, #tpu.memory_space<vmem>>, vector<8x128xf32>,
    return
  }
  func.func @transform_0(%arg0: i32) -> (i32, i32) {
    %c0_i32 = arith.constant 0 : i32
    %c0_i32_0 = arith.constant 0 : i32
    %c0_i32_1 = arith.constant 0 : i32
    return %c0_i32, %c0_i32_0 : i32, i32
  }
  func.func @transform_1(%arg0: i32) -> (i32, i32) {
    %c0_i32 = arith.constant 0 : i32
    %c0_i32_0 = arith.constant 0 : i32
    %c0_i32_1 = arith.constant 0 : i32
    return %c0_i32, %c0_i32_0 : i32, i32
  }
}

module attributes {stable_mosaic.version = 11 : i64} {
  func.func @_mlp_kernel_resident(%arg0: i32, %arg1: memref<16x128xf32, #tpu.memory_space<vmem>>, %arg2: memref<128x384xbf16, #tpu.memory_space<vmem>>, %arg3: memref<1x384xf32, #tpu.memory_space<vmem>>, %arg4: memref<384x128xbf16, #tpu.memory_space<vmem>>, %arg5: memref<1x128xf32, #tpu.memory_space<vmem>>, %arg6: memref<16x128xf32, #tpu.memory_space<vmem>>) attributes {dimension_semantics = [#tpu.dimension_semantics<parallel>], iteration_bounds = array<i64: 1>, scalar_prefetch = 0 : i64, scratch_operands = 0 : i64, tpu.core_type = #tpu.core_type<tc>, window_params = [{transform_indices = @transform_0, window_bounds = array<i64: 16, 128>}, {pipeline_mode = #tpu.pipeline_mode<synchronous>, transform_indices = @transform_1, window_bounds = array<i64: 128, 384>}, {pipeline_mode = #tpu.pipeline_mode<synchronous>, transform_indices = @transform_2, window_bounds = array<i64: 1, 384>}, {pipeline_mode = #tpu.pipeline_mode<synchronous>, transform_indices = @transform_3, window_bounds = array<i64: 384, 128>}, {pipeline_mode = #tpu.pipeline_mode<synchronous>, transform_indices = @transform_4, window_bounds = array<i64: 1, 128>}, {transform_indices = @transform_5, window_bounds = array<i64: 16, 128>}]} {
    %c0 = arith.constant 0 : index
    %c0_0 = arith.constant 0 : index
    %0 = vector.load %arg1[%c0, %c0_0] : memref<16x128xf32, #tpu.memory_space<vmem>>, vector<16x128xf32>
    %1 = arith.truncf %0 : vector<16x128xf32> to vector<16x128xbf16>
    %c0_1 = arith.constant 0 : index
    %c0_2 = arith.constant 0 : index
    %2 = vector.load %arg2[%c0_1, %c0_2] : memref<128x384xbf16, #tpu.memory_space<vmem>>, vector<128x384xbf16>
    %cst = arith.constant dense<0.000000e+00> : vector<16x384xf32>
    %3 = tpu.matmul %1, %2, %cst {dimension_numbers = #tpu.dot_dimension_numbers<[1], [0], [0], [1], [0, 0, 1, 1], [], []>} : vector<16x128xbf16>, vector<128x384xbf16>, vector<16x384xf32> -> vector<16x384xf32>
    %c0_3 = arith.constant 0 : index
    %c0_4 = arith.constant 0 : index
    %4 = vector.load %arg3[%c0_3, %c0_4] : memref<1x384xf32, #tpu.memory_space<vmem>>, vector<1x384xf32>
    %5 = vector.broadcast %4 : vector<1x384xf32> to vector<16x384xf32>
    %6 = arith.addf %3, %5 : vector<16x384xf32>
    %cst_5 = arith.constant 0.000000e+00 : f32
    %7 = vector.broadcast %cst_5 : f32 to vector<16x384xf32>
    %8 = arith.maximumf %6, %7 : vector<16x384xf32>
    %cst_6 = arith.constant 6.000000e+00 : f32
    %9 = vector.broadcast %cst_6 : f32 to vector<16x384xf32>
    %10 = arith.minimumf %8, %9 : vector<16x384xf32>
    %11 = arith.truncf %10 : vector<16x384xf32> to vector<16x384xbf16>
    %c0_7 = arith.constant 0 : index
    %c0_8 = arith.constant 0 : index
    %12 = vector.load %arg4[%c0_7, %c0_8] : memref<384x128xbf16, #tpu.memory_space<vmem>>, vector<384x128xbf16>
    %cst_9 = arith.constant dense<0.000000e+00> : vector<16x128xf32>
    %13 = tpu.matmul %11, %12, %cst_9 {dimension_numbers = #tpu.dot_dimension_numbers<[1], [0], [0], [1], [0, 0, 1, 1], [], []>} : vector<16x384xbf16>, vector<384x128xbf16>, vector<16x128xf32> -> vector<16x128xf32>
    %c0_10 = arith.constant 0 : index
    %c0_11 = arith.constant 0 : index
    %14 = vector.load %arg5[%c0_10, %c0_11] : memref<1x128xf32, #tpu.memory_space<vmem>>, vector<1x128xf32>
    %15 = vector.broadcast %14 : vector<1x128xf32> to vector<16x128xf32>
    %16 = arith.addf %13, %15 : vector<16x128xf32>
    %c0_12 = arith.constant 0 : index
    %c0_13 = arith.constant 0 : index
    %17 = vector.load %arg6[%c0_12, %c0_13] : memref<16x128xf32, #tpu.memory_space<vmem>>, vector<16x128xf32>
    tpu.vector_store %arg6[%c0_12, %c0_13], %16 {strides = array<i32>} : memref<16x128xf32, #tpu.memory_space<vmem>>, vector<16x128xf32>,
    return
  }
  func.func @transform_0(%arg0: i32) -> (i32, i32) {
    %c0_i32 = arith.constant 0 : i32
    %c0_i32_0 = arith.constant 0 : i32
    return %arg0, %c0_i32 : i32, i32
  }
  func.func @transform_1(%arg0: i32) -> (i32, i32) {
    %c0_i32 = arith.constant 0 : i32
    %c0_i32_0 = arith.constant 0 : i32
    %c0_i32_1 = arith.constant 0 : i32
    return %c0_i32, %c0_i32_0 : i32, i32
  }
  func.func @transform_2(%arg0: i32) -> (i32, i32) {
    %c0_i32 = arith.constant 0 : i32
    %c0_i32_0 = arith.constant 0 : i32
    %c0_i32_1 = arith.constant 0 : i32
    return %c0_i32, %c0_i32_0 : i32, i32
  }
  func.func @transform_3(%arg0: i32) -> (i32, i32) {
    %c0_i32 = arith.constant 0 : i32
    %c0_i32_0 = arith.constant 0 : i32
    %c0_i32_1 = arith.constant 0 : i32
    return %c0_i32, %c0_i32_0 : i32, i32
  }
  func.func @transform_4(%arg0: i32) -> (i32, i32) {
    %c0_i32 = arith.constant 0 : i32
    %c0_i32_0 = arith.constant 0 : i32
    %c0_i32_1 = arith.constant 0 : i32
    return %c0_i32, %c0_i32_0 : i32, i32
  }
  func.func @transform_5(%arg0: i32) -> (i32, i32) {
    %c0_i32 = arith.constant 0 : i32
    %c0_i32_0 = arith.constant 0 : i32
    return %arg0, %c0_i32 : i32, i32
  }
}

</mosaic_0001>

<llo_original>
// kernel: tpu_custom_call.1
$region0: #{tpu_custom_call.1}
  #allocation0 [shape = 'u32[]', space=smem, size = 0x4, offset = 0x4, fixed_abs, tag = 'smem constant byte address 0x4 - core index']
  #allocation1 [shape = 'u32[144,128]{1,0:T(1,128)}', space=vmem, size = 0x12000, scoped, tag = 'internal scratch']
  %s0 = inlined_call_operand.hbm [shape: f32[8,128], index: 0, kind: input, shape index: {}]
  %s1 = inlined_call_operand.hbm [shape: f32[8,128], index: 1, kind: output, shape index: {}]
  %s2 = sld [smem:[#allocation0]]
  $region18: #{tpu_custom_call.1} parent=0
    _
  %s4 = ssub.s32 1, %s2
  %s5 = scalar_select 0, %s4, %s2
  $region1: #{tpu_custom_call.1} parent=0
    #allocation2 [shape = 'u8[4096]{0}', space=vmem, size = 0x1000, scoped, tag = 'input window, operand 0, single buffered']
    #allocation3 [shape = 's32[1]{0}', space=sflag, size = 0x4, scoped, tag = 'scoped memory for tpu_custom_call.1']
    #allocation4 [shape = 's32[1]{0}', space=sflag, size = 0x4, scoped, tag = 'scoped memory for tpu_custom_call.1']
    #allocation5 [shape = 'u8[4096]{0}', space=vmem, size = 0x1000, scoped, tag = 'output window, operand 0, single buffered']
    %6 = vsyncpa [#allocation3], 0
    %7 = vsyncpa [#allocation4], 0
    // Predicated region
    $region2: #{tpu_custom_call.1} parent=1 // pred_check
      _
    $region3: #{tpu_custom_call.1} parent=1 // pred_check_branch
      %9 = sbr.rel (0) target = $region5
    $region4: #{tpu_custom_call.1} parent=1 // pred_region
      %s11 = ssub.s32 128, 128
      %12 = vsyncadd [#allocation3], %s11
      %s14 = sshll.u32 [#allocation2], 4
      %s15 = int_to_ptr.vmem [resolvable:$true] %s14
      %17 = dma.hbm_to_vmem [thread:$0]  %s0, 128, %s15, [#allocation3]
    $region5: #{tpu_custom_call.1} parent=1 // pred_fallthru
      _
    // Predicated region
    $region6: #{tpu_custom_call.1} parent=1 // pred_check
      _
    $region7: #{tpu_custom_call.1} parent=1 // pred_check_branch
      %19 = sbr.rel (0) target = $region9
    $region8: #{tpu_custom_call.1} parent=1 // pred_region
      %20 = dma.done [#allocation3], 128
    $region9: #{tpu_custom_call.1} parent=1 // pred_fallthru
      _
    %v21 = vld [vmem:[#allocation2] sm:$0xff]
    %22 = vst [vmem:[#allocation5] sm:$0xff] %v21
    // Predicated region
    $region10: #{tpu_custom_call.1} parent=1 // pred_check
      _
    $region11: #{tpu_custom_call.1} parent=1 // pred_check_branch
      %24 = sbr.rel (0) target = $region13
    $region12: #{tpu_custom_call.1} parent=1 // pred_region
      %s26 = ssub.s32 128, 128
      %27 = vsyncadd [#allocation4], %s26
      %s29 = sshll.u32 [#allocation5], 4
      %s30 = int_to_ptr.vmem [resolvable:$true] %s29
      %32 = dma.vmem_to_hbm [thread:$0]  %s30, 128, %s1, [#allocation4]
    $region13: #{tpu_custom_call.1} parent=1 // pred_fallthru
      _
    // Predicated region
    $region14: #{tpu_custom_call.1} parent=1 // pred_check
      _
    $region15: #{tpu_custom_call.1} parent=1 // pred_check_branch
      %34 = sbr.rel (0) target = $region17
    $region16: #{tpu_custom_call.1} parent=1 // pred_region
      %35 = dma.done [#allocation4], 128
    $region17: #{tpu_custom_call.1} parent=1 // pred_fallthru
      _
    %36 = vsyncpa [#allocation3], 1
    %37 = vsyncpa [#allocation4], 1

// kernel: tpu_custom_call.1
$region0: #{tpu_custom_call.1}
  #allocation0 [shape = 'u32[]', space=smem, size = 0x4, offset = 0x4, fixed_abs, tag = 'smem constant byte address 0x4 - core index']
  #allocation1 [shape = 'u32[144,128]{1,0:T(1,128)}', space=vmem, size = 0x12000, scoped, tag = 'internal scratch']
  %s0 = inlined_call_operand.hbm [shape: f32[16,128], index: 0, kind: input, shape index: {}]
  %s1 = inlined_call_operand.hbm [shape: bf16[128,384], index: 1, kind: input, shape index: {}]
  %s2 = inlined_call_operand.vmem [shape: f32[1,384], index: 2, kind: input, shape index: {}]
  %s3 = inlined_call_operand.hbm [shape: bf16[384,128], index: 3, kind: input, shape index: {}]
  %s4 = inlined_call_operand.vmem [shape: f32[1,128], index: 4, kind: input, shape index: {}]
  %s5 = inlined_call_operand.hbm [shape: f32[16,128], index: 5, kind: output, shape index: {}]
  %s6 = sld [smem:[#allocation0]]
  $region42: #{tpu_custom_call.1} parent=0
    _
  %s8 = ssub.s32 1, %s6
  %s9 = scalar_select 0, %s8, %s6
  $region1: #{tpu_custom_call.1} parent=0
    #allocation2 [shape = 'u8[8192]{0}', space=vmem, size = 0x2000, scoped, tag = 'input window, operand 0, single buffered']
    #allocation3 [shape = 's32[1]{0}', space=sflag, size = 0x4, scoped, tag = 'scoped memory for tpu_custom_call.1']
    #allocation4 [shape = 's32[1]{0}', space=sflag, size = 0x4, scoped, tag = 'scoped memory for tpu_custom_call.1']
    #allocation5 [shape = 'u8[98304]{0}', space=vmem, size = 0x18000, scoped, tag = 'input window, operand 1, single buffered']
    #allocation6 [shape = 's32[1]{0}', space=sflag, size = 0x4, scoped, tag = 'scoped memory for tpu_custom_call.1']
    #allocation7 [shape = 'u8[98304]{0}', space=vmem, size = 0x18000, scoped, tag = 'input window, operand 3, single buffered']
    #allocation8 [shape = 'u8[8192]{0}', space=vmem, size = 0x2000, scoped, tag = 'output window, operand 0, single buffered']
    %10 = vsyncpa [#allocation3], 0
    %11 = vsyncpa [#allocation6], 0
    %12 = vsyncpa [#allocation4], 0
    // Predicated region
    $region2: #{tpu_custom_call.1} parent=1 // pred_check
      _
    $region3: #{tpu_custom_call.1} parent=1 // pred_check_branch
      %14 = sbr.rel (0) target = $region5
    $region4: #{tpu_custom_call.1} parent=1 // pred_region
      %s16 = ssub.s32 256, 256
      %17 = vsyncadd [#allocation3], %s16
      %s18 = sshll.u32 [#allocation2], 4
      %s19 = int_to_ptr.vmem [resolvable:$true] %s18
      %24 = dma.hbm_to_vmem [thread:$0]  %s0, 256, %s19, [#allocation3], 128, 128, 8
    $region5: #{tpu_custom_call.1} parent=1 // pred_fallthru
      _
    // Predicated region
    $region6: #{tpu_custom_call.1} parent=1 // pred_check
      _
    $region7: #{tpu_custom_call.1} parent=1 // pred_check_branch
      %26 = sbr.rel (0) target = $region9
    $region8: #{tpu_custom_call.1} parent=1 // pred_region
      %s28 = ssub.s32 3072, 3072
      %29 = vsyncadd [#allocation6], %s28
      %s30 = sshll.u32 [#allocation5], 4
      %s31 = int_to_ptr.vmem [resolvable:$true] %s30
      %36 = dma.hbm_to_vmem [thread:$0]  %s1, 3072, %s31, [#allocation6], 192, 192, 12
    $region9: #{tpu_custom_call.1} parent=1 // pred_fallthru
      _
    // Predicated region
    $region10: #{tpu_custom_call.1} parent=1 // pred_check
      _
    $region11: #{tpu_custom_call.1} parent=1 // pred_check_branch
      %38 = sbr.rel (0) target = $region13
    $region12: #{tpu_custom_call.1} parent=1 // pred_region
      _
    $region13: #{tpu_custom_call.1} parent=1 // pred_fallthru
      _
    // Predicated region
    $region14: #{tpu_custom_call.1} parent=1 // pred_check
      _
    $region15: #{tpu_custom_call.1} parent=1 // pred_check_branch
      %40 = sbr.rel (0) target = $region17
    $region16: #{tpu_custom_call.1} parent=1 // pred_region
      %s42 = ssub.s32 3072, 3072
      %43 = vsyncadd [#allocation6], %s42
      %s44 = sshll.u32 [#allocation7], 4
      %s45 = int_to_ptr.vmem [resolvable:$true] %s44
      %50 = dma.hbm_to_vmem [thread:$0]  %s3, 3072, %s45, [#allocation6], 64, 64, 4
    $region17: #{tpu_custom_call.1} parent=1 // pred_fallthru
      _
    // Predicated region
    $region18: #{tpu_custom_call.1} parent=1 // pred_check
      _
    $region19: #{tpu_custom_call.1} parent=1 // pred_check_branch
      %52 = sbr.rel (0) target = $region21
    $region20: #{tpu_custom_call.1} parent=1 // pred_region
      _
    $region21: #{tpu_custom_call.1} parent=1 // pred_fallthru
      _
    // Predicated region
    $region22: #{tpu_custom_call.1} parent=1 // pred_check
      _
    $region23: #{tpu_custom_call.1} parent=1 // pred_check_branch
      %54 = sbr.rel (0) target = $region25
    $region24: #{tpu_custom_call.1} parent=1 // pred_region
      %55 = dma.done [#allocation3], 256
    $region25: #{tpu_custom_call.1} parent=1 // pred_fallthru
      _
    // Predicated region
    $region26: #{tpu_custom_call.1} parent=1 // pred_check
      _
    $region27: #{tpu_custom_call.1} parent=1 // pred_check_branch
      %57 = sbr.rel (0) target = $region29
    $region28: #{tpu_custom_call.1} parent=1 // pred_region
      %58 = dma.done [#allocation6], 3072
    $region29: #{tpu_custom_call.1} parent=1 // pred_fallthru
      _
    // Predicated region
    $region30: #{tpu_custom_call.1} parent=1 // pred_check
      _
    $region31: #{tpu_custom_call.1} parent=1 // pred_check_branch
      %60 = sbr.rel (0) target = $region33
    $region32: #{tpu_custom_call.1} parent=1 // pred_region
      %61 = dma.done [#allocation6], 3072
    $region33: #{tpu_custom_call.1} parent=1 // pred_fallthru
      _
    %v63 = vld [vmem:[#allocation2] sm:$0xff]
    %v64 = vld [vmem:[#allocation2 + $0x8] sm:$0xff]
    %v65 = vpack.c.bf16 %v64, %v63
    %v66 = vld [vmem:[#allocation5] sm:$0xff]
    %v67 = vld [vmem:[#allocation5 + $0x8] sm:$0xf]
    %v68 = vld [vmem:[#allocation5 + $0xc] sm:$0xff]
    %v69 = vld [vmem:[#allocation5 + $0x14] sm:$0xf]
    %v70 = vld [vmem:[#allocation5 + $0x18] sm:$0xff]
    %v71 = vld [vmem:[#allocation5 + $0x20] sm:$0xf]
    %v72 = vld [vmem:[#allocation5 + $0x24] sm:$0xff]
    %v73 = vld [vmem:[#allocation5 + $0x2c] sm:$0xf]
    %v74 = vld [vmem:[#allocation5 + $0x30] sm:$0xff]
    %v75 = vld [vmem:[#allocation5 + $0x38] sm:$0xf]
    %v76 = vld [vmem:[#allocation5 + $0x3c] sm:$0xff]
    %v77 = vld [vmem:[#allocation5 + $0x44] sm:$0xf]
    %v78 = vld [vmem:[#allocation5 + $0x48] sm:$0xff]
    %v79 = vld [vmem:[#allocation5 + $0x50] sm:$0xf]
    %v80 = vld [vmem:[#allocation5 + $0x54] sm:$0xff]
    %v81 = vld [vmem:[#allocation5 + $0x5c] sm:$0xf]
    %v82 = vld [vmem:[#allocation5 + $0x60] sm:$0xff]
    %v83 = vld [vmem:[#allocation5 + $0x68] sm:$0xf]
    %v84 = vld [vmem:[#allocation5 + $0x6c] sm:$0xff]
    %v85 = vld [vmem:[#allocation5 + $0x74] sm:$0xf]
    %v86 = vld [vmem:[#allocation5 + $0x78] sm:$0xff]
    %v87 = vld [vmem:[#allocation5 + $0x80] sm:$0xf]
    %v88 = vld [vmem:[#allocation5 + $0x84] sm:$0xff]
    %v89 = vld [vmem:[#allocation5 + $0x8c] sm:$0xf]
    %v90 = vld [vmem:[#allocation5 + $0x90] sm:$0xff]
    %v91 = vld [vmem:[#allocation5 + $0x98] sm:$0xf]
    %v92 = vld [vmem:[#allocation5 + $0x9c] sm:$0xff]
    %v93 = vld [vmem:[#allocation5 + $0xa4] sm:$0xf]
    %v94 = vld [vmem:[#allocation5 + $0xa8] sm:$0xff]
    %v95 = vld [vmem:[#allocation5 + $0xb0] sm:$0xf]
    %v96 = vld [vmem:[#allocation5 + $0xb4] sm:$0xff]
    %v97 = vld [vmem:[#allocation5 + $0xbc] sm:$0xf]
    %v98 = vld [vmem:[%s2] sm:$0x7]
    %v100 = vlaneseq
    %v101 = vshrl.u32 %v100, 7
    %v102 = vsub.s32 0, %v101
    %v103 = vrot.slane %v98, %v102
    %v104 = vlaneseq
    %v105 = vshrl.u32 %v104, 7
    %v106 = vsub.s32 1, %v105
    %v107 = vrot.slane %v98, %v106
    %v108 = vlaneseq
    %v109 = vshrl.u32 %v108, 7
    %v110 = vsub.s32 2, %v109
    %v111 = vrot.slane %v98, %v110
    %v147 = vunpack.c.l.b16 %v66
    %v148 = vunpack.c.h.b16 %v66
    %v149 = vunpack.c.l.b16 %v67
    %v150 = vunpack.c.l.b16 %v68
    %v151 = vunpack.c.h.b16 %v68
    %v152 = vunpack.c.l.b16 %v69
    %v153 = vunpack.c.l.b16 %v70
    %v154 = vunpack.c.h.b16 %v70
    %v155 = vunpack.c.l.b16 %v71
    %v156 = vunpack.c.l.b16 %v72
    %v157 = vunpack.c.h.b16 %v72
    %v158 = vunpack.c.l.b16 %v73
    %v159 = vunpack.c.l.b16 %v74
    %v160 = vunpack.c.h.b16 %v74
    %v161 = vunpack.c.l.b16 %v75
    %v162 = vunpack.c.l.b16 %v76
    %v163 = vunpack.c.h.b16 %v76
    %v164 = vunpack.c.l.b16 %v77
    %v165 = vunpack.c.l.b16 %v78
    %v166 = vunpack.c.h.b16 %v78
    %v167 = vunpack.c.l.b16 %v79
    %v168 = vunpack.c.l.b16 %v80
    %v169 = vunpack.c.h.b16 %v80
    %v170 = vunpack.c.l.b16 %v81
    %v171 = vunpack.c.l.b16 %v82
    %v172 = vunpack.c.h.b16 %v82
    %v173 = vunpack.c.l.b16 %v83
    %v174 = vunpack.c.l.b16 %v84
    %v175 = vunpack.c.h.b16 %v84
    %v176 = vunpack.c.l.b16 %v85
    %v177 = vunpack.c.l.b16 %v86
    %v178 = vunpack.c.h.b16 %v86
    %v179 = vunpack.c.l.b16 %v87
    %v180 = vunpack.c.l.b16 %v88
    %v181 = vunpack.c.h.b16 %v88
    %v182 = vunpack.c.l.b16 %v89
    %v183 = vunpack.c.l.b16 %v90
    %v184 = vunpack.c.h.b16 %v90
    %v185 = vunpack.c.l.b16 %v91
    %v186 = vunpack.c.l.b16 %v92
    %v187 = vunpack.c.h.b16 %v92
    %v188 = vunpack.c.l.b16 %v93
    %v189 = vunpack.c.l.b16 %v94
    %v190 = vunpack.c.h.b16 %v94
    %v191 = vunpack.c.l.b16 %v95
    %v192 = vunpack.c.l.b16 %v96
    %v193 = vunpack.c.h.b16 %v96
    %v194 = vunpack.c.l.b16 %v97
    %v195 = vpack.c.b16 %v150, %v147
    %v196 = vpack.c.b16 %v151, %v148
    %v197 = vpack.c.b16 %v152, %v149
    %v198 = vpack.c.b16 %v156, %v153
    %v199 = vpack.c.b16 %v157, %v154
    %v200 = vpack.c.b16 %v158, %v155
    %v201 = vpack.c.b16 %v162, %v159
    %v202 = vpack.c.b16 %v163, %v160
    %v203 = vpack.c.b16 %v164, %v161
    %v204 = vpack.c.b16 %v168, %v165
    %v205 = vpack.c.b16 %v169, %v166
    %v206 = vpack.c.b16 %v170, %v167
    %v207 = vpack.c.b16 %v174, %v171
    %v208 = vpack.c.b16 %v175, %v172
    %v209 = vpack.c.b16 %v176, %v173
    %v210 = vpack.c.b16 %v180, %v177
    %v211 = vpack.c.b16 %v181, %v178
    %v212 = vpack.c.b16 %v182, %v179
    %v213 = vpack.c.b16 %v186, %v183
    %v214 = vpack.c.b16 %v187, %v184
    %v215 = vpack.c.b16 %v188, %v185
    %v216 = vpack.c.b16 %v192, %v189
    %v217 = vpack.c.b16 %v193, %v190
    %v218 = vpack.c.b16 %v194, %v191
    %243 = vmatprep.subr.bf16.mxu0 %v217
    %244 = vmatpush1.bf16.msra.mxu0 %v216
    %245 = vmatprep.subr.bf16.mxu0 %v214
    %246 = vmatpush1.bf16.msra.mxu0 %v213
    %247 = vmatprep.subr.bf16.mxu0 %v211
    %248 = vmatpush1.bf16.msra.mxu0 %v210
    %249 = vmatprep.subr.bf16.mxu0 %v208
    %250 = vmatpush1.bf16.msra.mxu0 %v207
    %251 = vmatprep.subr.bf16.mxu0 %v205
    %252 = vmatpush1.bf16.msra.mxu0 %v204
    %253 = vmatprep.subr.bf16.mxu0 %v202
    %254 = vmatpush1.bf16.msra.mxu0 %v201
    %255 = vmatprep.subr.bf16.mxu0 %v199
    %256 = vmatpush1.bf16.msra.mxu0 %v198
    %257 = vmatprep.subr.bf16.mxu0 %v196
    %258 = vmatpush1.bf16.msra.mxu0 %v195
    %259 = vmatprep.subr.bf16.mxu0 0
    %260 = vmatpush2.bf16.msra.mxu0 0
    %261 = vmatprep.subr.bf16.mxu0 0
    %262 = vmatpush2.bf16.msra.mxu0 0
    %263 = vmatprep.subr.bf16.mxu0 0
    %264 = vmatpush2.bf16.msra.mxu0 0
    %265 = vmatprep.subr.bf16.mxu0 0
    %266 = vmatpush2.bf16.msra.mxu0 0
    %267 = vmatprep.subr.bf16.mxu0 0
    %268 = vmatpush2.bf16.msra.mxu0 0
    %269 = vmatprep.subr.bf16.mxu0 0
    %270 = vmatpush2.bf16.msra.mxu0 0
    %271 = vmatprep.subr.bf16.mxu0 0
    %272 = vmatpush2.bf16.msra.mxu0 0
    %273 = vmatprep.subr.bf16.mxu0 0
    %274 = vmatpush2.bf16.msra.mxu0 0
    %275 = vmatprep.mubr.bf16.mxu0 0
    %276 = vmatmul.mubr.bf16.gmra.mxu0 %v65
    %v277 = vpop.f32.mrf.mxu0
    %v278 = vadd.f32 %v103, %v277
    %v279 = vpop.f32.mrf.mxu0
    %v280 = vadd.f32 %v107, %v279
    %v281 = vpop.f32.mrf.mxu0
    %v282 = vadd.f32 %v103, %v281
    %v283 = vpop.f32.mrf.mxu0
    %v284 = vadd.f32 %v107, %v283
    %285 = vdwg.mxu0
    %286 = vmatprep.subr.bf16.mxu0 0
    %287 = vmatpush1.bf16.msra.mxu0 %v218
    %288 = vmatprep.subr.bf16.mxu0 0
    %289 = vmatpush1.bf16.msra.mxu0 %v215
    %290 = vmatprep.subr.bf16.mxu0 0
    %291 = vmatpush1.bf16.msra.mxu0 %v212
    %292 = vmatprep.subr.bf16.mxu0 0
    %293 = vmatpush1.bf16.msra.mxu0 %v209
    %294 = vmatprep.subr.bf16.mxu0 0
    %295 = vmatpush1.bf16.msra.mxu0 %v206
    %296 = vmatprep.subr.bf16.mxu0 0
    %297 = vmatpush1.bf16.msra.mxu0 %v203
    %298 = vmatprep.subr.bf16.mxu0 0
    %299 = vmatpush1.bf16.msra.mxu0 %v200
    %300 = vmatprep.subr.bf16.mxu0 0
    %301 = vmatpush1.bf16.msra.mxu0 %v197
    %302 = vmatprep.subr.bf16.mxu0 0
    %303 = vmatpush2.bf16.msra.mxu0 0
    %304 = vmatprep.subr.bf16.mxu0 0
    %305 = vmatpush2.bf16.msra.mxu0 0
    %306 = vmatprep.subr.bf16.mxu0 0
    %307 = vmatpush2.bf16.msra.mxu0 0
    %308 = vmatprep.subr.bf16.mxu0 0
    %309 = vmatpush2.bf16.msra.mxu0 0
    %310 = vmatprep.subr.bf16.mxu0 0
    %311 = vmatpush2.bf16.msra.mxu0 0
    %312 = vmatprep.subr.bf16.mxu0 0
    %313 = vmatpush2.bf16.msra.mxu0 0
    %314 = vmatprep.subr.bf16.mxu0 0
    %315 = vmatpush2.bf16.msra.mxu0 0
    %316 = vmatprep.subr.bf16.mxu0 0
    %317 = vmatpush2.bf16.msra.mxu0 0
    %318 = vmatprep.mubr.bf16.mxu0 0
    %319 = vmatmul.mubr.bf16.gmra.mxu0 %v65
    %v320 = vpop.f32.mrf.mxu0
    %v321 = vadd.f32 %v111, %v320
    %v322 = vpop.f32.mrf.mxu0
    %v323 = vpop.f32.mrf.mxu0
    %v324 = vadd.f32 %v111, %v323
    %v325 = vpop.f32.mrf.mxu0
    %326 = vdwg.mxu0
    %v327 = vmax.f32 %v278, 0.0
    %v328 = vmax.f32 %v280, 0.0
    %v329 = vmax.f32 %v321, 0.0
    %v330 = vmax.f32 %v282, 0.0
    %v331 = vmax.f32 %v284, 0.0
    %v332 = vmax.f32 %v324, 0.0
    %v333 = vmin.f32 %v327, 6.0
    %v334 = vmin.f32 %v328, 6.0
    %v335 = vmin.f32 %v329, 6.0
    %v336 = vmin.f32 %v330, 6.0
    %v337 = vmin.f32 %v331, 6.0
    %v338 = vmin.f32 %v332, 6.0
    %v339 = vpack.c.bf16 %v336, %v333
    %v340 = vpack.c.bf16 %v337, %v334
    %v341 = vpack.c.bf16 %v338, %v335
    %v342 = vld [vmem:[#allocation7] sm:$0xf]
    %v343 = vld [vmem:[#allocation7 + $0x4] sm:$0xf]
    %v344 = vld [vmem:[#allocation7 + $0x8] sm:$0xf]
    %v345 = vld [vmem:[#allocation7 + $0xc] sm:$0xf]
    %v346 = vld [vmem:[#allocation7 + $0x10] sm:$0xf]
    %v347 = vld [vmem:[#allocation7 + $0x14] sm:$0xf]
    %v348 = vld [vmem:[#allocation7 + $0x18] sm:$0xf]
    %v349 = vld [vmem:[#allocation7 + $0x1c] sm:$0xf]
    %v350 = vld [vmem:[#allocation7 + $0x20] sm:$0xf]
    %v351 = vld [vmem:[#allocation7 + $0x24] sm:$0xf]
    %v352 = vld [vmem:[#allocation7 + $0x28] sm:$0xf]
    %v353 = vld [vmem:[#allocation7 + $0x2c] sm:$0xf]
    %v354 = vld [vmem:[#allocation7 + $0x30] sm:$0xf]
    %v355 = vld [vmem:[#allocation7 + $0x34] sm:$0xf]
    %v356 = vld [vmem:[#allocation7 + $0x38] sm:$0xf]
    %v357 = vld [vmem:[#allocation7 + $0x3c] sm:$0xf]
    %v358 = vld [vmem:[#allocation7 + $0x40] sm:$0xf]
    %v359 = vld [vmem:[#allocation7 + $0x44] sm:$0xf]
    %v360 = vld [vmem:[#allocation7 + $0x48] sm:$0xf]
    %v361 = vld [vmem:[#allocation7 + $0x4c] sm:$0xf]
    %v362 = vld [vmem:[#allocation7 + $0x50] sm:$0xf]
    %v363 = vld [vmem:[#allocation7 + $0x54] sm:$0xf]
    %v364 = vld [vmem:[#allocation7 + $0x58] sm:$0xf]
    %v365 = vld [vmem:[#allocation7 + $0x5c] sm:$0xf]
    %v366 = vld [vmem:[#allocation7 + $0x60] sm:$0xf]
    %v367 = vld [vmem:[#allocation7 + $0x64] sm:$0xf]
    %v368 = vld [vmem:[#allocation7 + $0x68] sm:$0xf]
    %v369 = vld [vmem:[#allocation7 + $0x6c] sm:$0xf]
    %v370 = vld [vmem:[#allocation7 + $0x70] sm:$0xf]
    %v371 = vld [vmem:[#allocation7 + $0x74] sm:$0xf]
    %v372 = vld [vmem:[#allocation7 + $0x78] sm:$0xf]
    %v373 = vld [vmem:[#allocation7 + $0x7c] sm:$0xf]
    %v374 = vld [vmem:[#allocation7 + $0x80] sm:$0xf]
    %v375 = vld [vmem:[#allocation7 + $0x84] sm:$0xf]
    %v376 = vld [vmem:[#allocation7 + $0x88] sm:$0xf]
    %v377 = vld [vmem:[#allocation7 + $0x8c] sm:$0xf]
    %v378 = vld [vmem:[#allocation7 + $0x90] sm:$0xf]
    %v379 = vld [vmem:[#allocation7 + $0x94] sm:$0xf]
    %v380 = vld [vmem:[#allocation7 + $0x98] sm:$0xf]
    %v381 = vld [vmem:[#allocation7 + $0x9c] sm:$0xf]
    %v382 = vld [vmem:[#allocation7 + $0xa0] sm:$0xf]
    %v383 = vld [vmem:[#allocation7 + $0xa4] sm:$0xf]
    %v384 = vld [vmem:[#allocation7 + $0xa8] sm:$0xf]
    %v385 = vld [vmem:[#allocation7 + $0xac] sm:$0xf]
    %v386 = vld [vmem:[#allocation7 + $0xb0] sm:$0xf]
    %v387 = vld [vmem:[#allocation7 + $0xb4] sm:$0xf]
    %v388 = vld [vmem:[#allocation7 + $0xb8] sm:$0xf]
    %v389 = vld [vmem:[#allocation7 + $0xbc] sm:$0xf]
    %v390 = vld [vmem:[%s4] sm:$0x1]
    %v392 = vlaneseq
    %v393 = vshrl.u32 %v392, 7
    %v394 = vsub.s32 0, %v393
    %v395 = vrot.slane %v390, %v394
    %v445 = vunpack.c.l.b16 %v342
    %v446 = vunpack.c.l.b16 %v343
    %v447 = vunpack.c.l.b16 %v344
    %v448 = vunpack.c.l.b16 %v345
    %v449 = vunpack.c.l.b16 %v346
    %v450 = vunpack.c.l.b16 %v347
    %v451 = vunpack.c.l.b16 %v348
    %v452 = vunpack.c.l.b16 %v349
    %v453 = vunpack.c.l.b16 %v350
    %v454 = vunpack.c.l.b16 %v351
    %v455 = vunpack.c.l.b16 %v352
    %v456 = vunpack.c.l.b16 %v353
    %v457 = vunpack.c.l.b16 %v354
    %v458 = vunpack.c.l.b16 %v355
    %v459 = vunpack.c.l.b16 %v356
    %v460 = vunpack.c.l.b16 %v357
    %v461 = vunpack.c.l.b16 %v358
    %v462 = vunpack.c.l.b16 %v359
    %v463 = vunpack.c.l.b16 %v360
    %v464 = vunpack.c.l.b16 %v361
    %v465 = vunpack.c.l.b16 %v362
    %v466 = vunpack.c.l.b16 %v363
    %v467 = vunpack.c.l.b16 %v364
    %v468 = vunpack.c.l.b16 %v365
    %v469 = vunpack.c.l.b16 %v366
    %v470 = vunpack.c.l.b16 %v367
    %v471 = vunpack.c.l.b16 %v368
    %v472 = vunpack.c.l.b16 %v369
    %v473 = vunpack.c.l.b16 %v370
    %v474 = vunpack.c.l.b16 %v371
    %v475 = vunpack.c.l.b16 %v372
    %v476 = vunpack.c.l.b16 %v373
    %v477 = vunpack.c.l.b16 %v374
    %v478 = vunpack.c.l.b16 %v375
    %v479 = vunpack.c.l.b16 %v376
    %v480 = vunpack.c.l.b16 %v377
    %v481 = vunpack.c.l.b16 %v378
    %v482 = vunpack.c.l.b16 %v379
    %v483 = vunpack.c.l.b16 %v380
    %v484 = vunpack.c.l.b16 %v381
    %v485 = vunpack.c.l.b16 %v382
    %v486 = vunpack.c.l.b16 %v383
    %v487 = vunpack.c.l.b16 %v384
    %v488 = vunpack.c.l.b16 %v385
    %v489 = vunpack.c.l.b16 %v386
    %v490 = vunpack.c.l.b16 %v387
    %v491 = vunpack.c.l.b16 %v388
    %v492 = vunpack.c.l.b16 %v389
    %v493 = vpack.c.b16 %v446, %v445
    %v494 = vpack.c.b16 %v448, %v447
    %v495 = vpack.c.b16 %v450, %v449
    %v496 = vpack.c.b16 %v452, %v451
    %v497 = vpack.c.b16 %v454, %v453
    %v498 = vpack.c.b16 %v456, %v455
    %v499 = vpack.c.b16 %v458, %v457
    %v500 = vpack.c.b16 %v460, %v459
    %v501 = vpack.c.b16 %v462, %v461
    %v502 = vpack.c.b16 %v464, %v463
    %v503 = vpack.c.b16 %v466, %v465
    %v504 = vpack.c.b16 %v468, %v467
    %v505 = vpack.c.b16 %v470, %v469
    %v506 = vpack.c.b16 %v472, %v471
    %v507 = vpack.c.b16 %v474, %v473
    %v508 = vpack.c.b16 %v476, %v475
    %v509 = vpack.c.b16 %v478, %v477
    %v510 = vpack.c.b16 %v480, %v479
    %v511 = vpack.c.b16 %v482, %v481
    %v512 = vpack.c.b16 %v484, %v483
    %v513 = vpack.c.b16 %v486, %v485
    %v514 = vpack.c.b16 %v488, %v487
    %v515 = vpack.c.b16 %v490, %v489
    %v516 = vpack.c.b16 %v492, %v491
    %541 = vmatprep.subr.bf16.mxu0 0
    %542 = vmatpush1.bf16.msra.mxu0 %v500
    %543 = vmatprep.subr.bf16.mxu0 0
    %544 = vmatpush1.bf16.msra.mxu0 %v499
    %545 = vmatprep.subr.bf16.mxu0 0
    %546 = vmatpush1.bf16.msra.mxu0 %v498
    %547 = vmatprep.subr.bf16.mxu0 0
    %548 = vmatpush1.bf16.msra.mxu0 %v497
    %549 = vmatprep.subr.bf16.mxu0 0
    %550 = vmatpush1.bf16.msra.mxu0 %v496
    %551 = vmatprep.subr.bf16.mxu0 0
    %552 = vmatpush1.bf16.msra.mxu0 %v495
    %553 = vmatprep.subr.bf16.mxu0 0
    %554 = vmatpush1.bf16.msra.mxu0 %v494
    %555 = vmatprep.subr.bf16.mxu0 0
    %556 = vmatpush1.bf16.msra.mxu0 %v493
    %557 = vmatprep.subr.bf16.mxu0 0
    %558 = vmatpush2.bf16.msra.mxu0 %v508
    %559 = vmatprep.subr.bf16.mxu0 0
    %560 = vmatpush2.bf16.msra.mxu0 %v507
    %561 = vmatprep.subr.bf16.mxu0 0
    %562 = vmatpush2.bf16.msra.mxu0 %v506
    %563 = vmatprep.subr.bf16.mxu0 0
    %564 = vmatpush2.bf16.msra.mxu0 %v505
    %565 = vmatprep.subr.bf16.mxu0 0
    %566 = vmatpush2.bf16.msra.mxu0 %v504
    %567 = vmatprep.subr.bf16.mxu0 0
    %568 = vmatpush2.bf16.msra.mxu0 %v503
    %569 = vmatprep.subr.bf16.mxu0 0
    %570 = vmatpush2.bf16.msra.mxu0 %v502
    %571 = vmatprep.subr.bf16.mxu0 0
    %572 = vmatpush2.bf16.msra.mxu0 %v501
    %573 = vmatprep.mubr.bf16.mxu0 %v340
    %574 = vmatmul.mubr.bf16.gmra.mxu0 %v339
    %v575 = vpop.f32.mrf.mxu0
    %v576 = vadd.f32 %v395, %v575
    %v577 = vpop.f32.mrf.mxu0
    %v578 = vpop.f32.mrf.mxu0
    %v579 = vadd.f32 %v395, %v578
    %v580 = vpop.f32.mrf.mxu0
    %581 = vdwg.mxu0
    %582 = vmatprep.subr.bf16.mxu0 0
    %583 = vmatpush1.bf16.msra.mxu0 %v516
    %584 = vmatprep.subr.bf16.mxu0 0
    %585 = vmatpush1.bf16.msra.mxu0 %v515
    %586 = vmatprep.subr.bf16.mxu0 0
    %587 = vmatpush1.bf16.msra.mxu0 %v514
    %588 = vmatprep.subr.bf16.mxu0 0
    %589 = vmatpush1.bf16.msra.mxu0 %v513
    %590 = vmatprep.subr.bf16.mxu0 0
    %591 = vmatpush1.bf16.msra.mxu0 %v512
    %592 = vmatprep.subr.bf16.mxu0 0
    %593 = vmatpush1.bf16.msra.mxu0 %v511
    %594 = vmatprep.subr.bf16.mxu0 0
    %595 = vmatpush1.bf16.msra.mxu0 %v510
    %596 = vmatprep.subr.bf16.mxu0 0
    %597 = vmatpush1.bf16.msra.mxu0 %v509
    %598 = vmatprep.subr.bf16.mxu0 0
    %599 = vmatpush2.bf16.msra.mxu0 0
    %600 = vmatprep.subr.bf16.mxu0 0
    %601 = vmatpush2.bf16.msra.mxu0 0
    %602 = vmatprep.subr.bf16.mxu0 0
    %603 = vmatpush2.bf16.msra.mxu0 0
    %604 = vmatprep.subr.bf16.mxu0 0
    %605 = vmatpush2.bf16.msra.mxu0 0
    %606 = vmatprep.subr.bf16.mxu0 0
    %607 = vmatpush2.bf16.msra.mxu0 0
    %608 = vmatprep.subr.bf16.mxu0 0
    %609 = vmatpush2.bf16.msra.mxu0 0
    %610 = vmatprep.subr.bf16.mxu0 0
    %611 = vmatpush2.bf16.msra.mxu0 0
    %612 = vmatprep.subr.bf16.mxu0 0
    %613 = vmatpush2.bf16.msra.mxu0 0
    %614 = vmatprep.mubr.bf16.mxu0 0
    %615 = vmatmul.mubr.bf16.gmra.mxu0 %v341
    %v616 = vpop.f32.mrf.mxu0
    %v617 = vadd.f32 %v576, %v616
    %v618 = vpop.f32.mrf.mxu0
    %v619 = vpop.f32.mrf.mxu0
    %v620 = vadd.f32 %v579, %v619
    %v621 = vpop.f32.mrf.mxu0
    %622 = vdwg.mxu0
    %623 = vst [vmem:[#allocation8] sm:$0xff] %v617
    %624 = vst [vmem:[#allocation8 + $0x8] sm:$0xff] %v620
    // Predicated region
    $region34: #{tpu_custom_call.1} parent=1 // pred_check
      _
    $region35: #{tpu_custom_call.1} parent=1 // pred_check_branch
      %626 = sbr.rel (0) target = $region37
    $region36: #{tpu_custom_call.1} parent=1 // pred_region
      %s628 = ssub.s32 256, 256
      %629 = vsyncadd [#allocation4], %s628
      %s630 = sshll.u32 [#allocation8], 4
      %s631 = int_to_ptr.vmem [resolvable:$true] %s630
      %636 = dma.vmem_to_hbm [thread:$0]  %s631, 256, %s5, [#allocation4], 128, 128, 8
    $region37: #{tpu_custom_call.1} parent=1 // pred_fallthru
      _
    // Predicated region
    $region38: #{tpu_custom_call.1} parent=1 // pred_check
      _
    $region39: #{tpu_custom_call.1} parent=1 // pred_check_branch
      %638 = sbr.rel (0) target = $region41
    $region40: #{tpu_custom_call.1} parent=1 // pred_region
      %639 = dma.done [#allocation4], 256
    $region41: #{tpu_custom_call.1} parent=1 // pred_fallthru
      _
    %640 = vsyncpa [#allocation3], 1
    %641 = vsyncpa [#allocation6], 1
    %642 = vsyncpa [#allocation4], 1

</llo_original>
